<compile_context>
chip_gen: v7x
topology: tpu7x:2x2x1
jax: 0.10.0
libtpu: 0.0.40
codegen_flags: <defaults>
</compile_context>

<pallas_src>
import functools

import jax
import jax.numpy as jnp
from jax import lax
from jax.experimental import pallas as pl
from jax.experimental.pallas import tpu as pltpu

BN_EPS = 1e-5

_VMEM_LIMIT_BYTES = 32 * 1024 * 1024   # raised scoped-VMEM limit (safe on v5e/v6e/v7x)
_TILE_VMEM_BUDGET = 16 * 1024 * 1024   # budget for double-buffered x+out tiles in pass 2
_MAX_TILE_L = 16384                    # lane-tile cap (amortizes ~0.35us per-grid-step overhead)
_FUSED_BYTES_LIMIT = 6 * 1024 * 1024   # x + out + z-scratch must fit well inside scoped VMEM
_FUSED_MAX_N = 8                       # keep the static batch unroll small in the fused kernel


def _round_up(v, m):
    return (v + m - 1) // m * m


# --------------------------------------------------------------------------------------
# Fused single-call path (small activations): conv -> batch stats -> BN affine -> ReLU.
# --------------------------------------------------------------------------------------
def _fused_kernel(x_ref, w_ref, gamma_ref, beta_ref, o_ref, z_ref, *, n_batch, m_total):
    # x_ref: (N, C_in, L)  w_ref: (C_out, C_in)  gamma/beta: (C_out, 1)
    # o_ref: (N, C_out, L)  z_ref: (N, C_out, L) f32 scratch.
    w = w_ref[...]
    c_out = w.shape[0]
    s = jnp.zeros((c_out, 1), jnp.float32)
    ss = jnp.zeros((c_out, 1), jnp.float32)
    for n in range(n_batch):  # static, small (<= _FUSED_MAX_N)
        z = jnp.dot(w, x_ref[n], preferred_element_type=jnp.float32)   # (C_out, L)
        z_ref[n] = z
        s = s + jnp.sum(z, axis=1, keepdims=True)
        ss = ss + jnp.sum(z * z, axis=1, keepdims=True)
    mean = s / m_total
    var = jnp.maximum(ss / m_total - mean * mean, 0.0)
    inv_std = lax.rsqrt(var + BN_EPS)
    scale = gamma_ref[...] * inv_std
    shift = beta_ref[...] - mean * scale
    for n in range(n_batch):
        o_ref[n] = jnp.maximum(z_ref[n] * scale + shift, 0.0).astype(o_ref.dtype)


# --------------------------------------------------------------------------------------
# Tiled path, pass 1: Gram matrix + per-channel row sums of x (no z materialized).
# --------------------------------------------------------------------------------------
def _stats_kernel(x_ref, gram_ref, sum_ref):
    # x_ref: (1, C_in, tile_L); gram_ref: (1, C_in, C_in); sum_ref: (1, C_in, 1).
    # Accumulators are per-batch-slice (grid axis 0 is "parallel" -> shardable across TCs).
    @pl.when(pl.program_id(1) == 0)
    def _():
        gram_ref[...] = jnp.zeros_like(gram_ref)
        sum_ref[...] = jnp.zeros_like(sum_ref)

    xt = x_ref[0]                                                       # (C_in, tile_L)
    gram_ref[0] += lax.dot_general(
        xt, xt, (((1,), (1,)), ((), ())), preferred_element_type=jnp.float32)
    sum_ref[0] += jnp.sum(xt.astype(jnp.float32), axis=1, keepdims=True)


# --------------------------------------------------------------------------------------
# Tiled path, pass 2: z = W @ x, fused per-channel FMA + ReLU, lane-dense store.
# --------------------------------------------------------------------------------------
def _apply_kernel(x_ref, w_ref, scale_ref, shift_ref, o_ref):
    # x_ref: (1, C_in, tile_L)  w_ref: (C_out, C_in)  scale/shift: (C_out, 1)
    z = jnp.dot(w_ref[...], x_ref[0], preferred_element_type=jnp.float32)
    o_ref[0] = jnp.maximum(z * scale_ref[...] + shift_ref[...], 0.0).astype(o_ref.dtype)


def _choose_tile_l(L, C_in, C_out):
    """Largest multiple-of-128 lane tile that keeps double-buffered x+out tiles in budget."""
    bytes_per_lane_col = 2 * (C_in + C_out) * 4           # 2 buffers * (x + out) * f32
    cap = max(128, (_TILE_VMEM_BUDGET // bytes_per_lane_col) // 128 * 128)
    cap = min(cap, _MAX_TILE_L)
    return min(cap, _round_up(L, 128))


def mlp_conv_forward(x_ncl, conv_w, conv_b, bn_gamma, bn_beta, *,
                     compute_dtype=jnp.float32, force_tiled=False, tile_override=None):
    """x_ncl: (N, C_in, L) f32. conv_w: (C_out, C_in) (PyTorch Conv1d weight squeezed).
    Returns (N, C_out, L) f32: relu(batchnorm_train(conv1d_k1(x)))."""
    N, C_in, L = x_ncl.shape
    C_out = conv_w.shape[0]
    M = N * L

    gamma2 = bn_gamma.reshape(C_out, 1).astype(jnp.float32)
    beta2 = bn_beta.reshape(C_out, 1).astype(jnp.float32)
    # The Conv1d bias only shifts the per-channel mean and is exactly cancelled by
    # train-mode BatchNorm mean subtraction, so it folds out entirely.
    del conv_b

    w_run = conv_w.astype(compute_dtype)

    # ---- Fully fused single-call path for small activations. ----
    fused_bytes = 4 * (N * C_in * L + 2 * N * C_out * L) + 4 * C_out * C_in
    if (not force_tiled) and (N <= _FUSED_MAX_N) and (fused_bytes <= _FUSED_BYTES_LIMIT):
        x_run = x_ncl.astype(compute_dtype)
        kernel = functools.partial(_fused_kernel, n_batch=N, m_total=float(M))
        return pl.pallas_call(
            kernel,
            out_shape=jax.ShapeDtypeStruct((N, C_out, L), jnp.float32),
            grid=(1,),
            in_specs=[pl.BlockSpec((N, C_in, L), lambda i: (0, 0, 0)),
                      pl.BlockSpec((C_out, C_in), lambda i: (0, 0)),
                      pl.BlockSpec((C_out, 1), lambda i: (0, 0)),
                      pl.BlockSpec((C_out, 1), lambda i: (0, 0))],
            out_specs=pl.BlockSpec((N, C_out, L), lambda i: (0, 0, 0)),
            scratch_shapes=[pltpu.VMEM((N, C_out, L), jnp.float32)],
            compiler_params=pltpu.CompilerParams(
                dimension_semantics=("arbitrary",),
                vmem_limit_bytes=_VMEM_LIMIT_BYTES),
            cost_estimate=pl.CostEstimate(
                flops=2 * M * C_in * C_out + 8 * M * C_out,
                transcendentals=C_out,
                bytes_accessed=4 * (N * C_in * L + N * C_out * L + C_out * C_in)),
        )(x_run, w_run, gamma2, beta2)

    # ---- Tiled two-pass path (large activations). ----
    tile_l = tile_override if tile_override is not None else _choose_tile_l(L, C_in, C_out)
    tile_l = max(128, (tile_l // 128) * 128)
    L_pad = _round_up(L, tile_l)                       # never fall back to a full-L mega-tile
    x_run = x_ncl if L_pad == L else jnp.pad(x_ncl, ((0, 0), (0, 0), (0, L_pad - L)))
    x_run = x_run.astype(compute_dtype)
    n_tiles = L_pad // tile_l

    x_spec = pl.BlockSpec((1, C_in, tile_l), lambda n, t: (n, 0, t))

    # Pass 1: per-batch-slice Gram + row sums of x (zero padding contributes exactly 0).
    gram_parts, sum_parts = pl.pallas_call(
        _stats_kernel,
        out_shape=(jax.ShapeDtypeStruct((N, C_in, C_in), jnp.float32),
                   jax.ShapeDtypeStruct((N, C_in, 1), jnp.float32)),
        grid=(N, n_tiles),
        in_specs=[x_spec],
        out_specs=(pl.BlockSpec((1, C_in, C_in), lambda n, t: (n, 0, 0)),
                   pl.BlockSpec((1, C_in, 1), lambda n, t: (n, 0, 0))),
        compiler_params=pltpu.CompilerParams(
            dimension_semantics=("parallel", "arbitrary"),
            vmem_limit_bytes=_VMEM_LIMIT_BYTES),
        cost_estimate=pl.CostEstimate(
            flops=2 * N * L_pad * C_in * C_in + N * L_pad * C_in,
            transcendentals=0,
            bytes_accessed=4 * (N * C_in * L_pad + N * C_in * (C_in + 1))),
    )(x_run)

    # Tiny per-channel BN math (plain JAX on C-sized vectors).
    hp = jax.lax.Precision.HIGHEST
    w32 = conv_w.astype(jnp.float32)
    gram = jnp.sum(gram_parts, axis=0)                                  # (C_in, C_in)
    xsum = jnp.sum(sum_parts, axis=0)                                   # (C_in, 1)
    mean_z = jnp.dot(w32, xsum, precision=hp) / M                       # (C_out, 1)
    wg = jnp.dot(w32, gram, precision=hp)                               # (C_out, C_in)
    sumsq_z = jnp.sum(wg * w32, axis=1, keepdims=True)                  # diag(W G W^T)
    var_z = jnp.maximum(sumsq_z / M - mean_z * mean_z, 0.0)             # biased (train-mode BN)
    inv_std = lax.rsqrt(var_z + BN_EPS)
    scale = gamma2 * inv_std
    shift = beta2 - mean_z * scale

    # Pass 2: z = W @ x, fused per-channel FMA + ReLU; fully parallel grid (megacore).
    out = pl.pallas_call(
        _apply_kernel,
        out_shape=jax.ShapeDtypeStruct((N, C_out, L_pad), jnp.float32),
        grid=(N, n_tiles),
        in_specs=[x_spec,
                  pl.BlockSpec((C_out, C_in), lambda n, t: (0, 0)),
                  pl.BlockSpec((C_out, 1), lambda n, t: (0, 0)),
                  pl.BlockSpec((C_out, 1), lambda n, t: (0, 0))],
        out_specs=pl.BlockSpec((1, C_out, tile_l), lambda n, t: (n, 0, t)),
        compiler_params=pltpu.CompilerParams(
            dimension_semantics=("parallel", "parallel"),
            vmem_limit_bytes=_VMEM_LIMIT_BYTES),
        cost_estimate=pl.CostEstimate(
            flops=2 * N * L_pad * C_in * C_out + 3 * N * L_pad * C_out,
            transcendentals=0,
            bytes_accessed=4 * (N * C_in * L_pad + N * C_out * L_pad + C_out * C_in + 2 * C_out)),
    )(x_run, w_run, scale, shift)

    return out if L_pad == L else out[:, :, :L]


def reference_forward(x_ncl, conv_w, conv_b, bn_gamma, bn_beta):
    # Pure-JAX reference (Conv1d k=1 -> train-mode BatchNorm1d -> ReLU).
    y = jnp.einsum("ncl,oc->nol", x_ncl, conv_w,
                   precision=jax.lax.Precision.HIGHEST) + conv_b[None, :, None]
    mean = jnp.mean(y, axis=(0, 2), keepdims=True)
    var = jnp.mean((y - mean) ** 2, axis=(0, 2), keepdims=True)
    y_hat = (y - mean) * lax.rsqrt(var + BN_EPS)
    return jnp.maximum(bn_gamma[None, :, None] * y_hat + bn_beta[None, :, None], 0.0)


if __name__ == "__main__":
    # Shapes consistent with the module: input_size=16, output_size=32.
    N, C_in, C_out = 2, 16, 32

    key = jax.random.PRNGKey(0)
    kx1, kw, kb, kg, kbe, kx2 = jax.random.split(key, 6)

    conv_w = jax.random.normal(kw, (C_out, C_in), dtype=jnp.float32) * 0.1
    conv_b = jax.random.normal(kb, (C_out,), dtype=jnp.float32) * 0.1
    bn_gamma = 1.0 + 0.1 * jax.random.normal(kg, (C_out,), dtype=jnp.float32)
    bn_beta = 0.1 * jax.random.normal(kbe, (C_out,), dtype=jnp.float32)

    # 1) Small activation -> fully fused single-call path.
    L1 = 64
    x1 = jax.random.normal(kx1, (N, C_in, L1), dtype=jnp.float32)
    out1 = jax.block_until_ready(mlp_conv_forward(x1, conv_w, conv_b, bn_gamma, bn_beta))
    ref1 = reference_forward(x1, conv_w, conv_b, bn_gamma, bn_beta)
    assert out1.shape == (N, C_out, L1)
    assert jnp.allclose(out1, ref1, atol=2e-4, rtol=2e-4), "fused path mismatch vs reference"

    # 2) Tiled two-pass path (forced), with L not a multiple of 128 to exercise pad+slice.
    L2 = 200
    x2 = jax.random.normal(kx2, (N, C_in, L2), dtype=jnp.float32)
    out2 = jax.block_until_ready(
        mlp_conv_forward(x2, conv_w, conv_b, bn_gamma, bn_beta,
                         force_tiled=True, tile_override=128))
    ref2 = reference_forward(x2, conv_w, conv_b, bn_gamma, bn_beta)
    assert out2.shape == (N, C_out, L2)
    assert jnp.allclose(out2, ref2, atol=2e-4, rtol=2e-4), "tiled path mismatch vs reference"

    print("KERNEL_OK")
</pallas_src>

<mosaic_0001>
module attributes {stable_mosaic.version = 11 : i64} {
  func.func @_fused_kernel(%arg0: i32, %arg1: memref<2x16x64xf32, #tpu.memory_space<vmem>>, %arg2: memref<32x16xf32, #tpu.memory_space<vmem>>, %arg3: memref<32x1xf32, #tpu.memory_space<vmem>>, %arg4: memref<32x1xf32, #tpu.memory_space<vmem>>, %arg5: memref<2x32x64xf32, #tpu.memory_space<vmem>>, %arg6: memref<2x32x64xf32, #tpu.memory_space<vmem>>) attributes {dimension_semantics = [#tpu.dimension_semantics<arbitrary>], iteration_bounds = array<i64: 1>, scalar_prefetch = 0 : i64, scratch_operands = 1 : i64, tpu.core_type = #tpu.core_type<tc>, window_params = [{pipeline_mode = #tpu.pipeline_mode<synchronous>, transform_indices = @transform_0, window_bounds = array<i64: 2, 16, 64>}, {pipeline_mode = #tpu.pipeline_mode<synchronous>, transform_indices = @transform_1, window_bounds = array<i64: 32, 16>}, {pipeline_mode = #tpu.pipeline_mode<synchronous>, transform_indices = @transform_2, window_bounds = array<i64: 32, 1>}, {pipeline_mode = #tpu.pipeline_mode<synchronous>, transform_indices = @transform_3, window_bounds = array<i64: 32, 1>}, {pipeline_mode = #tpu.pipeline_mode<synchronous>, transform_indices = @transform_4, window_bounds = array<i64: 2, 32, 64>}]} {
    %c0 = arith.constant 0 : index
    %c0_0 = arith.constant 0 : index
    %0 = vector.load %arg2[%c0, %c0_0] : memref<32x16xf32, #tpu.memory_space<vmem>>, vector<32x16xf32>
    %cst = arith.constant 0.000000e+00 : f32
    %1 = vector.broadcast %cst : f32 to vector<32x1xf32>
    %cst_1 = arith.constant 0.000000e+00 : f32
    %2 = vector.broadcast %cst_1 : f32 to vector<32x1xf32>
    %c0_2 = arith.constant 0 : index
    %c0_3 = arith.constant 0 : index
    %c0_4 = arith.constant 0 : index
    %3 = vector.load %arg1[%c0_2, %c0_3, %c0_4] : memref<2x16x64xf32, #tpu.memory_space<vmem>>, vector<1x16x64xf32>
    %4 = vector.shape_cast %3 : vector<1x16x64xf32> to vector<16x64xf32>
    %cst_5 = arith.constant dense<0.000000e+00> : vector<32x64xf32>
    %5 = tpu.matmul %0, %4, %cst_5 {dimension_numbers = #tpu.dot_dimension_numbers<[1], [0], [0], [1], [0, 0, 1, 1], [], []>} : vector<32x16xf32>, vector<16x64xf32>, vector<32x64xf32> -> vector<32x64xf32>
    %c0_6 = arith.constant 0 : index
    %c0_7 = arith.constant 0 : index
    %c0_8 = arith.constant 0 : index
    %6 = vector.load %arg6[%c0_6, %c0_7, %c0_8] : memref<2x32x64xf32, #tpu.memory_space<vmem>>, vector<1x32x64xf32>
    %7 = vector.shape_cast %6 : vector<1x32x64xf32> to vector<32x64xf32>
    %8 = vector.shape_cast %5 : vector<32x64xf32> to vector<1x32x64xf32>
    tpu.vector_store %arg6[%c0_6, %c0_7, %c0_8], %8 {strides = array<i32>} : memref<2x32x64xf32, #tpu.memory_space<vmem>>, vector<1x32x64xf32>,
    %cst_9 = arith.constant dense<0.000000e+00> : vector<32xf32>
    %9 = vector.multi_reduction <add>, %5, %cst_9 [1] : vector<32x64xf32> to vector<32xf32>
    %10 = vector.shape_cast %9 : vector<32xf32> to vector<32x1xf32>
    %11 = arith.addf %1, %10 : vector<32x1xf32>
    %12 = arith.mulf %5, %5 : vector<32x64xf32>
    %cst_10 = arith.constant dense<0.000000e+00> : vector<32xf32>
    %13 = vector.multi_reduction <add>, %12, %cst_10 [1] : vector<32x64xf32> to vector<32xf32>
    %14 = vector.shape_cast %13 : vector<32xf32> to vector<32x1xf32>
    %15 = arith.addf %2, %14 : vector<32x1xf32>
    %c1 = arith.constant 1 : index
    %c0_11 = arith.constant 0 : index
    %c0_12 = arith.constant 0 : index
    %16 = vector.load %arg1[%c1, %c0_11, %c0_12] : memref<2x16x64xf32, #tpu.memory_space<vmem>>, vector<1x16x64xf32>
    %17 = vector.shape_cast %16 : vector<1x16x64xf32> to vector<16x64xf32>
    %cst_13 = arith.constant dense<0.000000e+00> : vector<32x64xf32>
    %18 = tpu.matmul %0, %17, %cst_13 {dimension_numbers = #tpu.dot_dimension_numbers<[1], [0], [0], [1], [0, 0, 1, 1], [], []>} : vector<32x16xf32>, vector<16x64xf32>, vector<32x64xf32> -> vector<32x64xf32>
    %c1_14 = arith.constant 1 : index
    %c0_15 = arith.constant 0 : index
    %c0_16 = arith.constant 0 : index
    %19 = vector.load %arg6[%c1_14, %c0_15, %c0_16] : memref<2x32x64xf32, #tpu.memory_space<vmem>>, vector<1x32x64xf32>
    %20 = vector.shape_cast %19 : vector<1x32x64xf32> to vector<32x64xf32>
    %21 = vector.shape_cast %18 : vector<32x64xf32> to vector<1x32x64xf32>
    tpu.vector_store %arg6[%c1_14, %c0_15, %c0_16], %21 {strides = array<i32>} : memref<2x32x64xf32, #tpu.memory_space<vmem>>, vector<1x32x64xf32>,
    %cst_17 = arith.constant dense<0.000000e+00> : vector<32xf32>
    %22 = vector.multi_reduction <add>, %18, %cst_17 [1] : vector<32x64xf32> to vector<32xf32>
    %23 = vector.shape_cast %22 : vector<32xf32> to vector<32x1xf32>
    %24 = arith.addf %11, %23 : vector<32x1xf32>
    %25 = arith.mulf %18, %18 : vector<32x64xf32>
    %cst_18 = arith.constant dense<0.000000e+00> : vector<32xf32>
    %26 = vector.multi_reduction <add>, %25, %cst_18 [1] : vector<32x64xf32> to vector<32xf32>
    %27 = vector.shape_cast %26 : vector<32xf32> to vector<32x1xf32>
    %28 = arith.addf %15, %27 : vector<32x1xf32>
    %cst_19 = arith.constant 1.280000e+02 : f32
    %29 = vector.broadcast %cst_19 : f32 to vector<32x1xf32>
    %30 = arith.divf %24, %29 : vector<32x1xf32>
    %cst_20 = arith.constant 1.280000e+02 : f32
    %31 = vector.broadcast %cst_20 : f32 to vector<32x1xf32>
    %32 = arith.divf %28, %31 : vector<32x1xf32>
    %33 = arith.mulf %30, %30 : vector<32x1xf32>
    %34 = arith.subf %32, %33 : vector<32x1xf32>
    %cst_21 = arith.constant 0.000000e+00 : f32
    %35 = vector.broadcast %cst_21 : f32 to vector<32x1xf32>
    %36 = arith.maximumf %34, %35 : vector<32x1xf32>
    %cst_22 = arith.constant 9.99999974E-6 : f32
    %37 = vector.broadcast %cst_22 : f32 to vector<32x1xf32>
    %38 = arith.addf %36, %37 : vector<32x1xf32>
    %39 = math.rsqrt %38 : vector<32x1xf32>
    %c0_23 = arith.constant 0 : index
    %c0_24 = arith.constant 0 : index
    %40 = vector.load %arg3[%c0_23, %c0_24] : memref<32x1xf32, #tpu.memory_space<vmem>>, vector<32x1xf32>
    %41 = arith.mulf %40, %39 : vector<32x1xf32>
    %c0_25 = arith.constant 0 : index
    %c0_26 = arith.constant 0 : index
    %42 = vector.load %arg4[%c0_25, %c0_26] : memref<32x1xf32, #tpu.memory_space<vmem>>, vector<32x1xf32>
    %43 = arith.mulf %30, %41 : vector<32x1xf32>
    %44 = arith.subf %42, %43 : vector<32x1xf32>
    %c0_27 = arith.constant 0 : index
    %c0_28 = arith.constant 0 : index
    %c0_29 = arith.constant 0 : index
    %45 = vector.load %arg6[%c0_27, %c0_28, %c0_29] : memref<2x32x64xf32, #tpu.memory_space<vmem>>, vector<1x32x64xf32>
    %46 = vector.shape_cast %45 : vector<1x32x64xf32> to vector<32x64xf32>
    %47 = vector.broadcast %41 : vector<32x1xf32> to vector<32x64xf32>
    %48 = arith.mulf %46, %47 : vector<32x64xf32>
    %49 = vector.broadcast %44 : vector<32x1xf32> to vector<32x64xf32>
    %50 = arith.addf %48, %49 : vector<32x64xf32>
    %cst_30 = arith.constant 0.000000e+00 : f32
    %51 = vector.broadcast %cst_30 : f32 to vector<32x64xf32>
    %52 = arith.maximumf %50, %51 : vector<32x64xf32>
    %c0_31 = arith.constant 0 : index
    %c0_32 = arith.constant 0 : index
    %c0_33 = arith.constant 0 : index
    %53 = vector.load %arg5[%c0_31, %c0_32, %c0_33] : memref<2x32x64xf32, #tpu.memory_space<vmem>>, vector<1x32x64xf32>
    %54 = vector.shape_cast %53 : vector<1x32x64xf32> to vector<32x64xf32>
    %55 = vector.shape_cast %52 : vector<32x64xf32> to vector<1x32x64xf32>
    tpu.vector_store %arg5[%c0_31, %c0_32, %c0_33], %55 {strides = array<i32>} : memref<2x32x64xf32, #tpu.memory_space<vmem>>, vector<1x32x64xf32>,
    %c1_34 = arith.constant 1 : index
    %c0_35 = arith.constant 0 : index
    %c0_36 = arith.constant 0 : index
    %56 = vector.load %arg6[%c1_34, %c0_35, %c0_36] : memref<2x32x64xf32, #tpu.memory_space<vmem>>, vector<1x32x64xf32>
    %57 = vector.shape_cast %56 : vector<1x32x64xf32> to vector<32x64xf32>
    %58 = vector.broadcast %41 : vector<32x1xf32> to vector<32x64xf32>
    %59 = arith.mulf %57, %58 : vector<32x64xf32>
    %60 = vector.broadcast %44 : vector<32x1xf32> to vector<32x64xf32>
    %61 = arith.addf %59, %60 : vector<32x64xf32>
    %cst_37 = arith.constant 0.000000e+00 : f32
    %62 = vector.broadcast %cst_37 : f32 to vector<32x64xf32>
    %63 = arith.maximumf %61, %62 : vector<32x64xf32>
    %c1_38 = arith.constant 1 : index
    %c0_39 = arith.constant 0 : index
    %c0_40 = arith.constant 0 : index
    %64 = vector.load %arg5[%c1_38, %c0_39, %c0_40] : memref<2x32x64xf32, #tpu.memory_space<vmem>>, vector<1x32x64xf32>
    %65 = vector.shape_cast %64 : vector<1x32x64xf32> to vector<32x64xf32>
    %66 = vector.shape_cast %63 : vector<32x64xf32> to vector<1x32x64xf32>
    tpu.vector_store %arg5[%c1_38, %c0_39, %c0_40], %66 {strides = array<i32>} : memref<2x32x64xf32, #tpu.memory_space<vmem>>, vector<1x32x64xf32>,
    return
  }
  func.func @transform_0(%arg0: i32) -> (i32, i32, i32) {
    %c0_i32 = arith.constant 0 : i32
    %c0_i32_0 = arith.constant 0 : i32
    %c0_i32_1 = arith.constant 0 : i32
    %c0_i32_2 = arith.constant 0 : i32
    return %c0_i32, %c0_i32_0, %c0_i32_1 : i32, i32, i32
  }
  func.func @transform_1(%arg0: i32) -> (i32, i32) {
    %c0_i32 = arith.constant 0 : i32
    %c0_i32_0 = arith.constant 0 : i32
    %c0_i32_1 = arith.constant 0 : i32
    return %c0_i32, %c0_i32_0 : i32, i32
  }
  func.func @transform_2(%arg0: i32) -> (i32, i32) {
    %c0_i32 = arith.constant 0 : i32
    %c0_i32_0 = arith.constant 0 : i32
    %c0_i32_1 = arith.constant 0 : i32
    return %c0_i32, %c0_i32_0 : i32, i32
  }
  func.func @transform_3(%arg0: i32) -> (i32, i32) {
    %c0_i32 = arith.constant 0 : i32
    %c0_i32_0 = arith.constant 0 : i32
    %c0_i32_1 = arith.constant 0 : i32
    return %c0_i32, %c0_i32_0 : i32, i32
  }
  func.func @transform_4(%arg0: i32) -> (i32, i32, i32) {
    %c0_i32 = arith.constant 0 : i32
    %c0_i32_0 = arith.constant 0 : i32
    %c0_i32_1 = arith.constant 0 : i32
    %c0_i32_2 = arith.constant 0 : i32
    return %c0_i32, %c0_i32_0, %c0_i32_1 : i32, i32, i32
  }
}

</mosaic_0001>

<llo_original>
// kernel: tpu_custom_call.1
$region0: #{tpu_custom_call.1}
  #allocation0 [shape = 'u32[]', space=smem, size = 0x4, offset = 0x4, fixed_abs, tag = 'smem constant byte address 0x4 - core index']
  #allocation1 [shape = 'u32[144,128]{1,0:T(1,128)}', space=vmem, size = 0x12000, scoped, tag = 'internal scratch']
  #allocation2 [shape = 'f32[2,32,64]{2,1,0:T(8,128)}', space=vmem, size = 0x8000, scoped, tag = 'scratch operand']
  %s0 = inlined_call_operand.vmem [shape: f32[2,16,64], index: 0, kind: input, shape index: {}]
  %s1 = inlined_call_operand.vmem [shape: f32[32,16], index: 1, kind: input, shape index: {}]
  %s2 = inlined_call_operand.vmem [shape: f32[32,1], index: 2, kind: input, shape index: {}]
  %s3 = inlined_call_operand.vmem [shape: f32[32,1], index: 3, kind: input, shape index: {}]
  %s4 = inlined_call_operand.hbm [shape: f32[2,32,64], index: 4, kind: output, shape index: {}]
  %s5 = sld [smem:[#allocation0]]
  $region26: #{tpu_custom_call.1} parent=0
    _
  %s7 = ssub.s32 1, %s5
  %s8 = scalar_select 0, %s7, %s5
  $region1: #{tpu_custom_call.1} parent=0
    #allocation3 [shape = 'u8[32768]{0}', space=vmem, size = 0x8000, scoped, tag = 'output window, operand 0, single buffered']
    #allocation4 [shape = 's32[1]{0}', space=sflag, size = 0x4, scoped, tag = 'scoped memory for tpu_custom_call.1']
    %9 = vsyncpa [#allocation4], 0
    // Predicated region
    $region2: #{tpu_custom_call.1} parent=1 // pred_check
      _
    $region3: #{tpu_custom_call.1} parent=1 // pred_check_branch
      %11 = sbr.rel (0) target = $region5
    $region4: #{tpu_custom_call.1} parent=1 // pred_region
      _
    $region5: #{tpu_custom_call.1} parent=1 // pred_fallthru
      _
    // Predicated region
    $region6: #{tpu_custom_call.1} parent=1 // pred_check
      _
    $region7: #{tpu_custom_call.1} parent=1 // pred_check_branch
      %13 = sbr.rel (0) target = $region9
    $region8: #{tpu_custom_call.1} parent=1 // pred_region
      _
    $region9: #{tpu_custom_call.1} parent=1 // pred_fallthru
      _
    // Predicated region
    $region10: #{tpu_custom_call.1} parent=1 // pred_check
      _
    $region11: #{tpu_custom_call.1} parent=1 // pred_check_branch
      %15 = sbr.rel (0) target = $region13
    $region12: #{tpu_custom_call.1} parent=1 // pred_region
      _
    $region13: #{tpu_custom_call.1} parent=1 // pred_fallthru
      _
    // Predicated region
    $region14: #{tpu_custom_call.1} parent=1 // pred_check
      _
    $region15: #{tpu_custom_call.1} parent=1 // pred_check_branch
      %17 = sbr.rel (0) target = $region17
    $region16: #{tpu_custom_call.1} parent=1 // pred_region
      _
    $region17: #{tpu_custom_call.1} parent=1 // pred_fallthru
      _
    %v18 = vld [vmem:[%s1] sm:$0xff]
    %v19 = vld [vmem:[%s1 + $0x8] sm:$0xff]
    %v20 = vld [vmem:[%s1 + $0x10] sm:$0xff]
    %v21 = vld [vmem:[%s1 + $0x18] sm:$0xff]
    %v22 = vld [vmem:[%s0] sm:$0xff]
    %v23 = vld [vmem:[%s0 + $0x8] sm:$0xff]
    %vm24 = vcmask 130048
    %v26 = vsel %vm24, %v18, 0
    %v29 = vsel %vm24, %v19, 0
    %v32 = vsel %vm24, %v20, 0
    %v35 = vsel %vm24, %v21, 0
    %37 = vmatprep.subr.mxu0 0.0
    %38 = vmatpush1.msra.mxu0 %v22
    %39 = vmatprep.subr.mxu0 0.0
    %40 = vmatpush1.msra.mxu0 %v23
    %41 = vmatprep.subr.mxu0 0.0
    %42 = vmatpush1.msra.mxu0 0.0
    %43 = vmatprep.subr.mxu0 0.0
    %44 = vmatpush1.msra.mxu0 0.0
    %45 = vmatprep.subr.mxu0 0.0
    %46 = vmatpush1.msra.mxu0 0.0
    %47 = vmatprep.subr.mxu0 0.0
    %48 = vmatpush1.msra.mxu0 0.0
    %49 = vmatprep.subr.mxu0 0.0
    %50 = vmatpush1.msra.mxu0 0.0
    %51 = vmatprep.subr.mxu0 0.0
    %52 = vmatpush1.msra.mxu0 0.0
    %53 = vmatprep.subr.mxu0 0.0
    %54 = vmatpush1.msra.mxu0 0.0
    %55 = vmatprep.subr.mxu0 0.0
    %56 = vmatpush1.msra.mxu0 0.0
    %57 = vmatprep.subr.mxu0 0.0
    %58 = vmatpush1.msra.mxu0 0.0
    %59 = vmatprep.subr.mxu0 0.0
    %60 = vmatpush1.msra.mxu0 0.0
    %61 = vmatprep.subr.mxu0 0.0
    %62 = vmatpush1.msra.mxu0 0.0
    %63 = vmatprep.subr.mxu0 0.0
    %64 = vmatpush1.msra.mxu0 0.0
    %65 = vmatprep.subr.mxu0 0.0
    %66 = vmatpush1.msra.mxu0 0.0
    %67 = vmatprep.subr.mxu0 0.0
    %68 = vmatpush1.msra.mxu0 0.0
    %69 = vmatprep.subr.mxu0 0.0
    %70 = vmatpush1.msra.mxu0 0.0
    %71 = vmatprep.subr.mxu0 0.0
    %72 = vmatpush1.msra.mxu0 0.0
    %73 = vmatprep.subr.mxu0 0.0
    %74 = vmatpush1.msra.mxu0 0.0
    %75 = vmatprep.subr.mxu0 0.0
    %76 = vmatpush1.msra.mxu0 0.0
    %77 = vmatprep.subr.mxu0 0.0
    %78 = vmatpush1.msra.mxu0 0.0
    %79 = vmatprep.subr.mxu0 0.0
    %80 = vmatpush1.msra.mxu0 0.0
    %81 = vmatprep.subr.mxu0 0.0
    %82 = vmatpush1.msra.mxu0 0.0
    %83 = vmatprep.subr.mxu0 0.0
    %84 = vmatpush1.msra.mxu0 0.0
    %85 = vmatprep.subr.mxu0 0.0
    %86 = vmatpush1.msra.mxu0 0.0
    %87 = vmatprep.subr.mxu0 0.0
    %88 = vmatpush1.msra.mxu0 0.0
    %89 = vmatprep.subr.mxu0 0.0
    %90 = vmatpush1.msra.mxu0 0.0
    %91 = vmatprep.subr.mxu0 0.0
    %92 = vmatpush1.msra.mxu0 0.0
    %93 = vmatprep.subr.mxu0 0.0
    %94 = vmatpush1.msra.mxu0 0.0
    %95 = vmatprep.subr.mxu0 0.0
    %96 = vmatpush1.msra.mxu0 0.0
    %97 = vmatprep.subr.mxu0 0.0
    %98 = vmatpush1.msra.mxu0 0.0
    %99 = vmatprep.subr.mxu0 0.0
    %100 = vmatpush1.msra.mxu0 0.0
    %101 = vmatprep.mubr.f32.mxu0 0.0
    %102 = vmatmul.mubr.f32.gmra.mrb[0].mxu0 %v26
    %v103 = vpop.f32.mrb[0].mxu0
    %v104 = vadd.f32 0.0, %v103
    %v105 = vpop.f32.mrb[0].mxu0
    %106 = vmatprep.mubr.f32.mxu0 0.0
    %107 = vmatmul.mubr.f32.gmra.mrb[0].mxu0 %v29
    %v108 = vpop.f32.mrb[0].mxu0
    %v109 = vadd.f32 0.0, %v108
    %v110 = vpop.f32.mrb[0].mxu0
    %111 = vmatprep.mubr.f32.mxu0 0.0
    %112 = vmatmul.mubr.f32.gmra.mrb[0].mxu0 %v32
    %v113 = vpop.f32.mrb[0].mxu0
    %v114 = vadd.f32 0.0, %v113
    %v115 = vpop.f32.mrb[0].mxu0
    %116 = vmatprep.mubr.f32.mxu0 0.0
    %117 = vmatmul.mubr.f32.gmra.mrb[0].mxu0 %v35
    %v118 = vpop.f32.mrb[0].mxu0
    %v119 = vadd.f32 0.0, %v118
    %v120 = vpop.f32.mrb[0].mxu0
    %121 = vdwg.mxu0
    %vm122 = vcmask 523264
    %123 = vst.msk [vmem:[#allocation2] sm:$0xff] %vm122, %v104
    %124 = vst.msk [vmem:[#allocation2 + $0x8] sm:$0xff] %vm122, %v109
    %125 = vst.msk [vmem:[#allocation2 + $0x10] sm:$0xff] %vm122, %v114
    %126 = vst.msk [vmem:[#allocation2 + $0x18] sm:$0xff] %vm122, %v119
    %v127 = vsel %vm122, %v104, 0.0
    %128 = vadd.xlane.f32.xlu0 %v127
    %v129 = vpop.xlane.xlu0 %128
    %v130 = vsel %vm122, %v109, 0.0
    %131 = vadd.xlane.f32.xlu0 %v130
    %v132 = vpop.xlane.xlu0 %131
    %v133 = vsel %vm122, %v114, 0.0
    %134 = vadd.xlane.f32.xlu0 %v133
    %v135 = vpop.xlane.xlu0 %134
    %v136 = vsel %vm122, %v119, 0.0
    %137 = vadd.xlane.f32.xlu0 %v136
    %v138 = vpop.xlane.xlu0 %137
    %v139 = vadd.f32 %v129, 0.0
    %v140 = vadd.f32 %v132, 0.0
    %v141 = vadd.f32 %v135, 0.0
    %v142 = vadd.f32 %v138, 0.0
    %v143 = vmul.f32 %v104, %v104
    %v144 = vmul.f32 %v109, %v109
    %v145 = vmul.f32 %v114, %v114
    %v146 = vmul.f32 %v119, %v119
    %v147 = vsel %vm122, %v143, 0.0
    %148 = vadd.xlane.f32.xlu0 %v147
    %v149 = vpop.xlane.xlu0 %148
    %v150 = vsel %vm122, %v144, 0.0
    %151 = vadd.xlane.f32.xlu0 %v150
    %v152 = vpop.xlane.xlu0 %151
    %v153 = vsel %vm122, %v145, 0.0
    %154 = vadd.xlane.f32.xlu0 %v153
    %v155 = vpop.xlane.xlu0 %154
    %v156 = vsel %vm122, %v146, 0.0
    %157 = vadd.xlane.f32.xlu0 %v156
    %v158 = vpop.xlane.xlu0 %157
    %v159 = vadd.f32 %v149, 0.0
    %v160 = vadd.f32 %v152, 0.0
    %v161 = vadd.f32 %v155, 0.0
    %v162 = vadd.f32 %v158, 0.0
    %s163 = scalar_lea.vmem %s0, 16
    %v164 = vld [vmem:[%s163] sm:$0xff]
    %v165 = vld [vmem:[%s163 + $0x8] sm:$0xff]
    %166 = vmatprep.subr.mxu0 0.0
    %167 = vmatpush1.msra.mxu0 %v164
    %168 = vmatprep.subr.mxu0 0.0
    %169 = vmatpush1.msra.mxu0 %v165
    %170 = vmatprep.subr.mxu0 0.0
    %171 = vmatpush1.msra.mxu0 0.0
    %172 = vmatprep.subr.mxu0 0.0
    %173 = vmatpush1.msra.mxu0 0.0
    %174 = vmatprep.subr.mxu0 0.0
    %175 = vmatpush1.msra.mxu0 0.0
    %176 = vmatprep.subr.mxu0 0.0
    %177 = vmatpush1.msra.mxu0 0.0
    %178 = vmatprep.subr.mxu0 0.0
    %179 = vmatpush1.msra.mxu0 0.0
    %180 = vmatprep.subr.mxu0 0.0
    %181 = vmatpush1.msra.mxu0 0.0
    %182 = vmatprep.subr.mxu0 0.0
    %183 = vmatpush1.msra.mxu0 0.0
    %184 = vmatprep.subr.mxu0 0.0
    %185 = vmatpush1.msra.mxu0 0.0
    %186 = vmatprep.subr.mxu0 0.0
    %187 = vmatpush1.msra.mxu0 0.0
    %188 = vmatprep.subr.mxu0 0.0
    %189 = vmatpush1.msra.mxu0 0.0
    %190 = vmatprep.subr.mxu0 0.0
    %191 = vmatpush1.msra.mxu0 0.0
    %192 = vmatprep.subr.mxu0 0.0
    %193 = vmatpush1.msra.mxu0 0.0
    %194 = vmatprep.subr.mxu0 0.0
    %195 = vmatpush1.msra.mxu0 0.0
    %196 = vmatprep.subr.mxu0 0.0
    %197 = vmatpush1.msra.mxu0 0.0
    %198 = vmatprep.subr.mxu0 0.0
    %199 = vmatpush1.msra.mxu0 0.0
    %200 = vmatprep.subr.mxu0 0.0
    %201 = vmatpush1.msra.mxu0 0.0
    %202 = vmatprep.subr.mxu0 0.0
    %203 = vmatpush1.msra.mxu0 0.0
    %204 = vmatprep.subr.mxu0 0.0
    %205 = vmatpush1.msra.mxu0 0.0
    %206 = vmatprep.subr.mxu0 0.0
    %207 = vmatpush1.msra.mxu0 0.0
    %208 = vmatprep.subr.mxu0 0.0
    %209 = vmatpush1.msra.mxu0 0.0
    %210 = vmatprep.subr.mxu0 0.0
    %211 = vmatpush1.msra.mxu0 0.0
    %212 = vmatprep.subr.mxu0 0.0
    %213 = vmatpush1.msra.mxu0 0.0
    %214 = vmatprep.subr.mxu0 0.0
    %215 = vmatpush1.msra.mxu0 0.0
    %216 = vmatprep.subr.mxu0 0.0
    %217 = vmatpush1.msra.mxu0 0.0
    %218 = vmatprep.subr.mxu0 0.0
    %219 = vmatpush1.msra.mxu0 0.0
    %220 = vmatprep.subr.mxu0 0.0
    %221 = vmatpush1.msra.mxu0 0.0
    %222 = vmatprep.subr.mxu0 0.0
    %223 = vmatpush1.msra.mxu0 0.0
    %224 = vmatprep.subr.mxu0 0.0
    %225 = vmatpush1.msra.mxu0 0.0
    %226 = vmatprep.subr.mxu0 0.0
    %227 = vmatpush1.msra.mxu0 0.0
    %228 = vmatprep.subr.mxu0 0.0
    %229 = vmatpush1.msra.mxu0 0.0
    %230 = vmatprep.mubr.f32.mxu0 0.0
    %231 = vmatmul.mubr.f32.gmra.mrb[0].mxu0 %v26
    %v232 = vpop.f32.mrb[0].mxu0
    %v233 = vadd.f32 0.0, %v232
    %v234 = vpop.f32.mrb[0].mxu0
    %235 = vmatprep.mubr.f32.mxu0 0.0
    %236 = vmatmul.mubr.f32.gmra.mrb[0].mxu0 %v29
    %v237 = vpop.f32.mrb[0].mxu0
    %v238 = vadd.f32 0.0, %v237
    %v239 = vpop.f32.mrb[0].mxu0
    %240 = vmatprep.mubr.f32.mxu0 0.0
    %241 = vmatmul.mubr.f32.gmra.mrb[0].mxu0 %v32
    %v242 = vpop.f32.mrb[0].mxu0
    %v243 = vadd.f32 0.0, %v242
    %v244 = vpop.f32.mrb[0].mxu0
    %245 = vmatprep.mubr.f32.mxu0 0.0
    %246 = vmatmul.mubr.f32.gmra.mrb[0].mxu0 %v35
    %v247 = vpop.f32.mrb[0].mxu0
    %v248 = vadd.f32 0.0, %v247
    %v249 = vpop.f32.mrb[0].mxu0
    %250 = vdwg.mxu0
    %s251 = scalar_lea.vmem [#allocation2], 32
    %252 = vst.msk [vmem:[%s251] sm:$0xff] %vm122, %v233
    %253 = vst.msk [vmem:[%s251 + $0x8] sm:$0xff] %vm122, %v238
    %254 = vst.msk [vmem:[%s251 + $0x10] sm:$0xff] %vm122, %v243
    %255 = vst.msk [vmem:[%s251 + $0x18] sm:$0xff] %vm122, %v248
    %v256 = vsel %vm122, %v233, 0.0
    %257 = vadd.xlane.f32.xlu0 %v256
    %v258 = vpop.xlane.xlu0 %257
    %v259 = vsel %vm122, %v238, 0.0
    %260 = vadd.xlane.f32.xlu0 %v259
    %v261 = vpop.xlane.xlu0 %260
    %v262 = vsel %vm122, %v243, 0.0
    %263 = vadd.xlane.f32.xlu0 %v262
    %v264 = vpop.xlane.xlu0 %263
    %v265 = vsel %vm122, %v248, 0.0
    %266 = vadd.xlane.f32.xlu0 %v265
    %v267 = vpop.xlane.xlu0 %266
    %v268 = vadd.f32 %v139, %v258
    %v269 = vadd.f32 %v140, %v261
    %v270 = vadd.f32 %v141, %v264
    %v271 = vadd.f32 %v142, %v267
    %v272 = vmul.f32 %v233, %v233
    %v273 = vmul.f32 %v238, %v238
    %v274 = vmul.f32 %v243, %v243
    %v275 = vmul.f32 %v248, %v248
    %v276 = vsel %vm122, %v272, 0.0
    %277 = vadd.xlane.f32.xlu0 %v276
    %v278 = vpop.xlane.xlu0 %277
    %v279 = vsel %vm122, %v273, 0.0
    %280 = vadd.xlane.f32.xlu0 %v279
    %v281 = vpop.xlane.xlu0 %280
    %v282 = vsel %vm122, %v274, 0.0
    %283 = vadd.xlane.f32.xlu0 %v282
    %v284 = vpop.xlane.xlu0 %283
    %v285 = vsel %vm122, %v275, 0.0
    %286 = vadd.xlane.f32.xlu0 %v285
    %v287 = vpop.xlane.xlu0 %286
    %v288 = vadd.f32 %v159, %v278
    %v289 = vadd.f32 %v160, %v281
    %v290 = vadd.f32 %v161, %v284
    %v291 = vadd.f32 %v162, %v287
    %v292 = vrcp.pop 128.0
    %v293 = vmul.f32 %v268, %v292
    %v294 = vmul.f32 %v269, %v292
    %v295 = vmul.f32 %v270, %v292
    %v296 = vmul.f32 %v271, %v292
    %v297 = vmul.f32 %v288, %v292
    %v298 = vmul.f32 %v289, %v292
    %v299 = vmul.f32 %v290, %v292
    %v300 = vmul.f32 %v291, %v292
    %v301 = vmul.f32 %v293, %v293
    %v302 = vmul.f32 %v294, %v294
    %v303 = vmul.f32 %v295, %v295
    %v304 = vmul.f32 %v296, %v296
    %v305 = vsub.f32 %v297, %v301
    %v306 = vsub.f32 %v298, %v302
    %v307 = vsub.f32 %v299, %v303
    %v308 = vsub.f32 %v300, %v304
    %v309 = vmax.f32 %v305, 0.0
    %v310 = vmax.f32 %v306, 0.0
    %v311 = vmax.f32 %v307, 0.0
    %v312 = vmax.f32 %v308, 0.0
    %v313 = vadd.f32 %v309, 1e-05
    %v314 = vadd.f32 %v310, 1e-05
    %v315 = vadd.f32 %v311, 1e-05
    %v316 = vadd.f32 %v312, 1e-05
    %v317 = vrsqrt.pop %v313
    %v318 = vrsqrt.pop %v314
    %v319 = vrsqrt.pop %v315
    %v320 = vrsqrt.pop %v316
    %v321 = vld [vmem:[%s2] sm:$0xff]
    %v322 = vld [vmem:[%s2 + $0x8] sm:$0xff]
    %v323 = vld [vmem:[%s2 + $0x10] sm:$0xff]
    %v324 = vld [vmem:[%s2 + $0x18] sm:$0xff]
    %v325 = vmul.f32 %v321, %v317
    %v326 = vmul.f32 %v322, %v318
    %v327 = vmul.f32 %v323, %v319
    %v328 = vmul.f32 %v324, %v320
    %v329 = vld [vmem:[%s3] sm:$0xff]
    %v330 = vld [vmem:[%s3 + $0x8] sm:$0xff]
    %v331 = vld [vmem:[%s3 + $0x10] sm:$0xff]
    %v332 = vld [vmem:[%s3 + $0x18] sm:$0xff]
    %v333 = vmul.f32 %v293, %v325
    %v334 = vmul.f32 %v294, %v326
    %v335 = vmul.f32 %v295, %v327
    %v336 = vmul.f32 %v296, %v328
    %v337 = vsub.f32 %v329, %v333
    %v338 = vsub.f32 %v330, %v334
    %v339 = vsub.f32 %v331, %v335
    %v340 = vsub.f32 %v332, %v336
    %v341 = vld [vmem:[#allocation2] sm:$0xff]
    %v342 = vld [vmem:[#allocation2 + $0x8] sm:$0xff]
    %v343 = vld [vmem:[#allocation2 + $0x10] sm:$0xff]
    %v344 = vld [vmem:[#allocation2 + $0x18] sm:$0xff]
    %346 = vset.pattern.permute.xlu0 0
    %347 = vperm.xlu0 %346, %v325
    %v348 = vpop.permute.xlu0 %347
    %351 = vset.pattern.permute.xlu0 0
    %352 = vperm.xlu0 %351, %v326
    %v353 = vpop.permute.xlu0 %352
    %356 = vset.pattern.permute.xlu0 0
    %357 = vperm.xlu0 %356, %v327
    %v358 = vpop.permute.xlu0 %357
    %361 = vset.pattern.permute.xlu0 0
    %362 = vperm.xlu0 %361, %v328
    %v363 = vpop.permute.xlu0 %362
    %v365 = vmul.f32 %v341, %v348
    %v366 = vmul.f32 %v342, %v353
    %v367 = vmul.f32 %v343, %v358
    %v368 = vmul.f32 %v344, %v363
    %370 = vset.pattern.permute.xlu0 0
    %371 = vperm.xlu0 %370, %v337
    %v372 = vpop.permute.xlu0 %371
    %375 = vset.pattern.permute.xlu0 0
    %376 = vperm.xlu0 %375, %v338
    %v377 = vpop.permute.xlu0 %376
    %380 = vset.pattern.permute.xlu0 0
    %381 = vperm.xlu0 %380, %v339
    %v382 = vpop.permute.xlu0 %381
    %385 = vset.pattern.permute.xlu0 0
    %386 = vperm.xlu0 %385, %v340
    %v387 = vpop.permute.xlu0 %386
    %v389 = vadd.f32 %v365, %v372
    %v390 = vadd.f32 %v366, %v377
    %v391 = vadd.f32 %v367, %v382
    %v392 = vadd.f32 %v368, %v387
    %v393 = vmax.f32 %v389, 0.0
    %v394 = vmax.f32 %v390, 0.0
    %v395 = vmax.f32 %v391, 0.0
    %v396 = vmax.f32 %v392, 0.0
    %397 = vst.msk [vmem:[#allocation3] sm:$0xff] %vm122, %v393
    %398 = vst.msk [vmem:[#allocation3 + $0x8] sm:$0xff] %vm122, %v394
    %399 = vst.msk [vmem:[#allocation3 + $0x10] sm:$0xff] %vm122, %v395
    %400 = vst.msk [vmem:[#allocation3 + $0x18] sm:$0xff] %vm122, %v396
    %v401 = vld [vmem:[%s251] sm:$0xff]
    %v402 = vld [vmem:[%s251 + $0x8] sm:$0xff]
    %v403 = vld [vmem:[%s251 + $0x10] sm:$0xff]
    %v404 = vld [vmem:[%s251 + $0x18] sm:$0xff]
    %v405 = vmul.f32 %v401, %v348
    %v406 = vmul.f32 %v402, %v353
    %v407 = vmul.f32 %v403, %v358
    %v408 = vmul.f32 %v404, %v363
    %v409 = vadd.f32 %v405, %v372
    %v410 = vadd.f32 %v406, %v377
    %v411 = vadd.f32 %v407, %v382
    %v412 = vadd.f32 %v408, %v387
    %v413 = vmax.f32 %v409, 0.0
    %v414 = vmax.f32 %v410, 0.0
    %v415 = vmax.f32 %v411, 0.0
    %v416 = vmax.f32 %v412, 0.0
    %s417 = scalar_lea.vmem [#allocation3], 32
    %418 = vst.msk [vmem:[%s417] sm:$0xff] %vm122, %v413
    %419 = vst.msk [vmem:[%s417 + $0x8] sm:$0xff] %vm122, %v414
    %420 = vst.msk [vmem:[%s417 + $0x10] sm:$0xff] %vm122, %v415
    %421 = vst.msk [vmem:[%s417 + $0x18] sm:$0xff] %vm122, %v416
    // Predicated region
    $region18: #{tpu_custom_call.1} parent=1 // pred_check
      _
    $region19: #{tpu_custom_call.1} parent=1 // pred_check_branch
      %423 = sbr.rel (0) target = $region21
    $region20: #{tpu_custom_call.1} parent=1 // pred_region
      %s425 = ssub.s32 1024, 1024
      %426 = vsyncadd [#allocation4], %s425
      %s427 = sshll.u32 [#allocation3], 4
      %s428 = int_to_ptr.vmem [resolvable:$true] %s427
      %433 = dma.vmem_to_hbm [thread:$0]  %s428, 1024, %s4, [#allocation4], 128, 128, 8
    $region21: #{tpu_custom_call.1} parent=1 // pred_fallthru
      _
    // Predicated region
    $region22: #{tpu_custom_call.1} parent=1 // pred_check
      _
    $region23: #{tpu_custom_call.1} parent=1 // pred_check_branch
      %435 = sbr.rel (0) target = $region25
    $region24: #{tpu_custom_call.1} parent=1 // pred_region
      %436 = dma.done [#allocation4], 1024
    $region25: #{tpu_custom_call.1} parent=1 // pred_fallthru
      _
    %437 = vsyncpa [#allocation4], 1

</llo_original>
